<compile_context>
chip_gen: v7x
topology: tpu7x:2x2x1
jax: 0.10.0
libtpu: 0.0.40
codegen_flags: <defaults>
</compile_context>

<pallas_src>
import math
import numpy as np
import jax
import jax.numpy as jnp
from jax.experimental import pallas as pl
from jax.experimental.pallas import tpu as pltpu


# ----------------------------------------------------------------------------
# Pallas kernel: fused forward pass for ALL reward heads in one invocation.
#   x_ref   : (B, Din)
#   w1c_ref : (Din, N*H1)   -- layer-1 weights of all heads concatenated
#   b1c_ref : (1,  N*H1)
#   w2_ref  : (N, H1, H2),  b2_ref: (N, 1, H2)
#   wo_ref  : (N, H2, O),   bo_ref: (N, 1, O)
#   out_ref : (B, N*O)      -- lane-dense output, un-flattened in the wrapper
# ----------------------------------------------------------------------------
def _hra_kernel(x_ref, w1c_ref, b1c_ref, w2_ref, b2_ref, wo_ref, bo_ref,
                out_ref):
    num_heads = w2_ref.shape[0]
    h1_size = w2_ref.shape[1]

    x = x_ref[...]                                              # (B, Din)

    # Layer 1 fused across heads: one MXU pass with N = num_heads * H1.
    h1 = jnp.dot(x, w1c_ref[...],
                 preferred_element_type=jnp.float32) + b1c_ref[...]
    h1 = jnp.maximum(h1, 0.0)                                   # (B, N*H1)

    # Layers 2 / output per head (static Python unroll, N is tiny).
    qs = []
    for n in range(num_heads):
        hn = h1[:, n * h1_size:(n + 1) * h1_size]               # (B, H1) static
        h2 = jnp.dot(hn, w2_ref[n],
                     preferred_element_type=jnp.float32) + b2_ref[n]
        h2 = jnp.maximum(h2, 0.0)                               # ReLU
        q = jnp.dot(h2, wo_ref[n],
                    preferred_element_type=jnp.float32) + bo_ref[n]
        qs.append(q)                                            # (B, O)

    # Single lane-dense store of the whole output slab.
    out_ref[...] = jnp.concatenate(qs, axis=-1).astype(out_ref.dtype)


def hra_forward(x_flat, params):
    """x_flat: (B, Din) float32.  params: dict of stacked per-head weights.

    Returns (num_heads, B, d_out), matching torch.stack(q_values)."""
    w1, b1, w2, b2, wo, bo = (params["w1"], params["b1"], params["w2"],
                              params["b2"], params["wo"], params["bo"])
    num_heads, d_in, h1 = w1.shape
    d_out = wo.shape[2]
    batch = x_flat.shape[0]

    # Concatenate layer-1 weights/biases across heads (done once in XLA):
    #   column block n of w1_cat == head n's W1, so slicing h1 per head below
    #   is numerically identical to the per-head x @ W1[n].
    w1_cat = jnp.transpose(w1, (1, 0, 2)).reshape(d_in, num_heads * h1)
    b1_cat = b1.reshape(1, num_heads * h1)

    out_flat = pl.pallas_call(
        _hra_kernel,
        out_shape=jax.ShapeDtypeStruct((batch, num_heads * d_out),
                                       jnp.float32),
        # No grid: single invocation; all operands are full-array VMEM-resident.
        compiler_params=pltpu.CompilerParams(vmem_limit_bytes=32 * 1024 * 1024),
    )(x_flat, w1_cat, b1_cat, w2, b2, wo, bo)

    # (B, N*O) -> (N, B, O) to match torch.stack over heads.
    return jnp.transpose(out_flat.reshape(batch, num_heads, d_out), (1, 0, 2))


# ----------------------------------------------------------------------------
# Deterministic parameter init (mimics torch xavier_uniform_ w/ relu gain,
# bias = 0.01).  Weights stored transposed: (head, in_dim, out_dim).
# ----------------------------------------------------------------------------
def _xavier_uniform_t(key, fan_in, fan_out, num_heads):
    gain = math.sqrt(2.0)  # nn.init.calculate_gain('relu')
    bound = gain * math.sqrt(6.0 / (fan_in + fan_out))
    return jax.random.uniform(key, (num_heads, fan_in, fan_out),
                              minval=-bound, maxval=bound, dtype=jnp.float32)


def init_params(key, num_heads, d_in, h1, h2, d_out):
    k1, k2, k3 = jax.random.split(key, 3)
    return {
        "w1": _xavier_uniform_t(k1, d_in, h1, num_heads),
        "b1": jnp.full((num_heads, 1, h1), 0.01, jnp.float32),
        "w2": _xavier_uniform_t(k2, h1, h2, num_heads),
        "b2": jnp.full((num_heads, 1, h2), 0.01, jnp.float32),
        "wo": _xavier_uniform_t(k3, h2, d_out, num_heads),
        "bo": jnp.full((num_heads, 1, d_out), 0.01, jnp.float32),
    }


# Pure-JAX reference (same math as the PyTorch module's forward)
def hra_reference(x_flat, p):
    outs = []
    for n in range(p["w1"].shape[0]):
        h = jnp.maximum(x_flat @ p["w1"][n] + p["b1"][n], 0.0)
        h = jnp.maximum(h @ p["w2"][n] + p["b2"][n], 0.0)
        outs.append(h @ p["wo"][n] + p["bo"][n])
    return jnp.stack(outs)  # (num_heads, B, out)


if __name__ == "__main__":
    # network_config (synthetic, deterministic):
    #   input_shape  = (4, 4, 4)  -> flattened 64
    #   output_shape = 4
    #   networks     = 3 reward heads, each with hidden layers [32, 32]
    B, C, H, W = 2, 4, 4, 4
    D_IN = C * H * W          # 64
    H1, H2 = 32, 32
    D_OUT = 4
    NUM_HEADS = 3

    key = jax.random.PRNGKey(0)
    kx, kp = jax.random.split(key)

    x = jax.random.normal(kx, (B, C, H, W), dtype=jnp.float32)   # NCHW input
    x_flat = x.reshape(B, D_IN)   # == torch x.view(-1, prod(shape[1:]))

    params = init_params(kp, NUM_HEADS, D_IN, H1, H2, D_OUT)

    out = hra_forward(x_flat, params)
    out = jax.block_until_ready(out)

    ref = hra_reference(x_flat, params)
    assert out.shape == (NUM_HEADS, B, D_OUT), out.shape
    np.testing.assert_allclose(np.asarray(out), np.asarray(ref),
                               rtol=1e-5, atol=1e-5)

    print("KERNEL_OK")
</pallas_src>

<mosaic_0001>
module attributes {stable_mosaic.version = 11 : i64} {
  func.func @_hra_kernel(%arg0: memref<2x64xf32, #tpu.memory_space<vmem>>, %arg1: memref<64x96xf32, #tpu.memory_space<vmem>>, %arg2: memref<1x96xf32, #tpu.memory_space<vmem>>, %arg3: memref<3x32x32xf32, #tpu.memory_space<vmem>>, %arg4: memref<3x1x32xf32, #tpu.memory_space<vmem>>, %arg5: memref<3x32x4xf32, #tpu.memory_space<vmem>>, %arg6: memref<3x1x4xf32, #tpu.memory_space<vmem>>, %arg7: memref<2x12xf32, #tpu.memory_space<vmem>>) attributes {dimension_semantics = [], scalar_prefetch = 0 : i64, scratch_operands = 0 : i64, tpu.core_type = #tpu.core_type<tc>} {
    %c0 = arith.constant 0 : index
    %c0_0 = arith.constant 0 : index
    %0 = vector.load %arg0[%c0, %c0_0] : memref<2x64xf32, #tpu.memory_space<vmem>>, vector<2x64xf32>
    %c0_1 = arith.constant 0 : index
    %c0_2 = arith.constant 0 : index
    %1 = vector.load %arg1[%c0_1, %c0_2] : memref<64x96xf32, #tpu.memory_space<vmem>>, vector<64x96xf32>
    %cst = arith.constant dense<0.000000e+00> : vector<2x96xf32>
    %2 = tpu.matmul %0, %1, %cst {dimension_numbers = #tpu.dot_dimension_numbers<[1], [0], [0], [1], [0, 0, 1, 1], [], []>} : vector<2x64xf32>, vector<64x96xf32>, vector<2x96xf32> -> vector<2x96xf32>
    %c0_3 = arith.constant 0 : index
    %c0_4 = arith.constant 0 : index
    %3 = vector.load %arg2[%c0_3, %c0_4] : memref<1x96xf32, #tpu.memory_space<vmem>>, vector<1x96xf32>
    %4 = vector.broadcast %3 : vector<1x96xf32> to vector<2x96xf32>
    %5 = arith.addf %2, %4 : vector<2x96xf32>
    %cst_5 = arith.constant 0.000000e+00 : f32
    %6 = vector.broadcast %cst_5 : f32 to vector<2x96xf32>
    %7 = arith.maximumf %5, %6 : vector<2x96xf32>
    %8 = vector.extract_strided_slice %7 {offsets = [0, 0], sizes = [2, 32], strides = [1, 1]} : vector<2x96xf32> to vector<2x32xf32>
    %c0_6 = arith.constant 0 : index
    %c0_7 = arith.constant 0 : index
    %c0_8 = arith.constant 0 : index
    %9 = vector.load %arg3[%c0_6, %c0_7, %c0_8] : memref<3x32x32xf32, #tpu.memory_space<vmem>>, vector<1x32x32xf32>
    %10 = vector.shape_cast %9 : vector<1x32x32xf32> to vector<32x32xf32>
    %cst_9 = arith.constant dense<0.000000e+00> : vector<2x32xf32>
    %11 = tpu.matmul %8, %10, %cst_9 {dimension_numbers = #tpu.dot_dimension_numbers<[1], [0], [0], [1], [0, 0, 1, 1], [], []>} : vector<2x32xf32>, vector<32x32xf32>, vector<2x32xf32> -> vector<2x32xf32>
    %c0_10 = arith.constant 0 : index
    %c0_11 = arith.constant 0 : index
    %c0_12 = arith.constant 0 : index
    %12 = vector.load %arg4[%c0_10, %c0_11, %c0_12] : memref<3x1x32xf32, #tpu.memory_space<vmem>>, vector<1x1x32xf32>
    %13 = vector.shape_cast %12 : vector<1x1x32xf32> to vector<1x32xf32>
    %14 = vector.broadcast %13 : vector<1x32xf32> to vector<2x32xf32>
    %15 = arith.addf %11, %14 : vector<2x32xf32>
    %cst_13 = arith.constant 0.000000e+00 : f32
    %16 = vector.broadcast %cst_13 : f32 to vector<2x32xf32>
    %17 = arith.maximumf %15, %16 : vector<2x32xf32>
    %c0_14 = arith.constant 0 : index
    %c0_15 = arith.constant 0 : index
    %c0_16 = arith.constant 0 : index
    %18 = vector.load %arg5[%c0_14, %c0_15, %c0_16] : memref<3x32x4xf32, #tpu.memory_space<vmem>>, vector<1x32x4xf32>
    %19 = vector.shape_cast %18 : vector<1x32x4xf32> to vector<32x4xf32>
    %cst_17 = arith.constant dense<0.000000e+00> : vector<2x4xf32>
    %20 = tpu.matmul %17, %19, %cst_17 {dimension_numbers = #tpu.dot_dimension_numbers<[1], [0], [0], [1], [0, 0, 1, 1], [], []>} : vector<2x32xf32>, vector<32x4xf32>, vector<2x4xf32> -> vector<2x4xf32>
    %c0_18 = arith.constant 0 : index
    %c0_19 = arith.constant 0 : index
    %c0_20 = arith.constant 0 : index
    %21 = vector.load %arg6[%c0_18, %c0_19, %c0_20] : memref<3x1x4xf32, #tpu.memory_space<vmem>>, vector<1x1x4xf32>
    %22 = vector.shape_cast %21 : vector<1x1x4xf32> to vector<1x4xf32>
    %23 = vector.broadcast %22 : vector<1x4xf32> to vector<2x4xf32>
    %24 = arith.addf %20, %23 : vector<2x4xf32>
    %25 = vector.extract_strided_slice %7 {offsets = [0, 32], sizes = [2, 32], strides = [1, 1]} : vector<2x96xf32> to vector<2x32xf32>
    %c1 = arith.constant 1 : index
    %c0_21 = arith.constant 0 : index
    %c0_22 = arith.constant 0 : index
    %26 = vector.load %arg3[%c1, %c0_21, %c0_22] : memref<3x32x32xf32, #tpu.memory_space<vmem>>, vector<1x32x32xf32>
    %27 = vector.shape_cast %26 : vector<1x32x32xf32> to vector<32x32xf32>
    %cst_23 = arith.constant dense<0.000000e+00> : vector<2x32xf32>
    %28 = tpu.matmul %25, %27, %cst_23 {dimension_numbers = #tpu.dot_dimension_numbers<[1], [0], [0], [1], [0, 0, 1, 1], [], []>} : vector<2x32xf32>, vector<32x32xf32>, vector<2x32xf32> -> vector<2x32xf32>
    %c1_24 = arith.constant 1 : index
    %c0_25 = arith.constant 0 : index
    %c0_26 = arith.constant 0 : index
    %29 = vector.load %arg4[%c1_24, %c0_25, %c0_26] : memref<3x1x32xf32, #tpu.memory_space<vmem>>, vector<1x1x32xf32>
    %30 = vector.shape_cast %29 : vector<1x1x32xf32> to vector<1x32xf32>
    %31 = vector.broadcast %30 : vector<1x32xf32> to vector<2x32xf32>
    %32 = arith.addf %28, %31 : vector<2x32xf32>
    %cst_27 = arith.constant 0.000000e+00 : f32
    %33 = vector.broadcast %cst_27 : f32 to vector<2x32xf32>
    %34 = arith.maximumf %32, %33 : vector<2x32xf32>
    %c1_28 = arith.constant 1 : index
    %c0_29 = arith.constant 0 : index
    %c0_30 = arith.constant 0 : index
    %35 = vector.load %arg5[%c1_28, %c0_29, %c0_30] : memref<3x32x4xf32, #tpu.memory_space<vmem>>, vector<1x32x4xf32>
    %36 = vector.shape_cast %35 : vector<1x32x4xf32> to vector<32x4xf32>
    %cst_31 = arith.constant dense<0.000000e+00> : vector<2x4xf32>
    %37 = tpu.matmul %34, %36, %cst_31 {dimension_numbers = #tpu.dot_dimension_numbers<[1], [0], [0], [1], [0, 0, 1, 1], [], []>} : vector<2x32xf32>, vector<32x4xf32>, vector<2x4xf32> -> vector<2x4xf32>
    %c1_32 = arith.constant 1 : index
    %c0_33 = arith.constant 0 : index
    %c0_34 = arith.constant 0 : index
    %38 = vector.load %arg6[%c1_32, %c0_33, %c0_34] : memref<3x1x4xf32, #tpu.memory_space<vmem>>, vector<1x1x4xf32>
    %39 = vector.shape_cast %38 : vector<1x1x4xf32> to vector<1x4xf32>
    %40 = vector.broadcast %39 : vector<1x4xf32> to vector<2x4xf32>
    %41 = arith.addf %37, %40 : vector<2x4xf32>
    %42 = vector.extract_strided_slice %7 {offsets = [0, 64], sizes = [2, 32], strides = [1, 1]} : vector<2x96xf32> to vector<2x32xf32>
    %c2 = arith.constant 2 : index
    %c0_35 = arith.constant 0 : index
    %c0_36 = arith.constant 0 : index
    %43 = vector.load %arg3[%c2, %c0_35, %c0_36] : memref<3x32x32xf32, #tpu.memory_space<vmem>>, vector<1x32x32xf32>
    %44 = vector.shape_cast %43 : vector<1x32x32xf32> to vector<32x32xf32>
    %cst_37 = arith.constant dense<0.000000e+00> : vector<2x32xf32>
    %45 = tpu.matmul %42, %44, %cst_37 {dimension_numbers = #tpu.dot_dimension_numbers<[1], [0], [0], [1], [0, 0, 1, 1], [], []>} : vector<2x32xf32>, vector<32x32xf32>, vector<2x32xf32> -> vector<2x32xf32>
    %c2_38 = arith.constant 2 : index
    %c0_39 = arith.constant 0 : index
    %c0_40 = arith.constant 0 : index
    %46 = vector.load %arg4[%c2_38, %c0_39, %c0_40] : memref<3x1x32xf32, #tpu.memory_space<vmem>>, vector<1x1x32xf32>
    %47 = vector.shape_cast %46 : vector<1x1x32xf32> to vector<1x32xf32>
    %48 = vector.broadcast %47 : vector<1x32xf32> to vector<2x32xf32>
    %49 = arith.addf %45, %48 : vector<2x32xf32>
    %cst_41 = arith.constant 0.000000e+00 : f32
    %50 = vector.broadcast %cst_41 : f32 to vector<2x32xf32>
    %51 = arith.maximumf %49, %50 : vector<2x32xf32>
    %c2_42 = arith.constant 2 : index
    %c0_43 = arith.constant 0 : index
    %c0_44 = arith.constant 0 : index
    %52 = vector.load %arg5[%c2_42, %c0_43, %c0_44] : memref<3x32x4xf32, #tpu.memory_space<vmem>>, vector<1x32x4xf32>
    %53 = vector.shape_cast %52 : vector<1x32x4xf32> to vector<32x4xf32>
    %cst_45 = arith.constant dense<0.000000e+00> : vector<2x4xf32>
    %54 = tpu.matmul %51, %53, %cst_45 {dimension_numbers = #tpu.dot_dimension_numbers<[1], [0], [0], [1], [0, 0, 1, 1], [], []>} : vector<2x32xf32>, vector<32x4xf32>, vector<2x4xf32> -> vector<2x4xf32>
    %c2_46 = arith.constant 2 : index
    %c0_47 = arith.constant 0 : index
    %c0_48 = arith.constant 0 : index
    %55 = vector.load %arg6[%c2_46, %c0_47, %c0_48] : memref<3x1x4xf32, #tpu.memory_space<vmem>>, vector<1x1x4xf32>
    %56 = vector.shape_cast %55 : vector<1x1x4xf32> to vector<1x4xf32>
    %57 = vector.broadcast %56 : vector<1x4xf32> to vector<2x4xf32>
    %58 = arith.addf %54, %57 : vector<2x4xf32>
    %59 = tpu.concatenate %24, %41, %58 in 1 : vector<2x4xf32>, vector<2x4xf32>, vector<2x4xf32> -> vector<2x12xf32>
    %c0_49 = arith.constant 0 : index
    %c0_50 = arith.constant 0 : index
    %60 = vector.load %arg7[%c0_49, %c0_50] : memref<2x12xf32, #tpu.memory_space<vmem>>, vector<2x12xf32>
    tpu.vector_store %arg7[%c0_49, %c0_50], %59 {strides = array<i32>} : memref<2x12xf32, #tpu.memory_space<vmem>>, vector<2x12xf32>,
    return
  }
}

</mosaic_0001>

<llo_original>
// kernel: tpu_custom_call.1
$region0: #{tpu_custom_call.1}
  #allocation0 [shape = 'u32[]', space=smem, size = 0x4, offset = 0x4, fixed_abs, tag = 'smem constant byte address 0x4 - core index']
  #allocation1 [shape = 'u32[144,128]{1,0:T(1,128)}', space=vmem, size = 0x12000, scoped, tag = 'internal scratch']
  %s0 = inlined_call_operand.vmem [shape: f32[2,64], index: 0, kind: input, shape index: {}]
  %s1 = inlined_call_operand.hbm [shape: f32[64,96], index: 1, kind: input, shape index: {}]
  %s2 = inlined_call_operand.vmem [shape: f32[1,96], index: 2, kind: input, shape index: {}]
  %s3 = inlined_call_operand.vmem [shape: f32[3,32,32], index: 3, kind: input, shape index: {}]
  %s4 = inlined_call_operand.vmem [shape: f32[3,1,32], index: 4, kind: input, shape index: {}]
  %s5 = inlined_call_operand.vmem [shape: f32[3,32,4], index: 5, kind: input, shape index: {}]
  %s6 = inlined_call_operand.vmem [shape: f32[3,1,4], index: 6, kind: input, shape index: {}]
  %s7 = inlined_call_operand.hbm [shape: f32[2,12], index: 7, kind: output, shape index: {}]
  %s8 = sld [smem:[#allocation0]]
  $region42: #{tpu_custom_call.1} parent=0
    _
  %s10 = ssub.s32 1, %s8
  %s11 = scalar_select 0, %s10, %s8
  $region1: #{tpu_custom_call.1} parent=0
    #allocation2 [shape = 'u8[32768]{0}', space=vmem, size = 0x8000, scoped, tag = 'input window, operand 1, single buffered']
    #allocation3 [shape = 's32[1]{0}', space=sflag, size = 0x4, scoped, tag = 'scoped memory for tpu_custom_call.1']
    #allocation4 [shape = 's32[1]{0}', space=sflag, size = 0x4, scoped, tag = 'scoped memory for tpu_custom_call.1']
    #allocation5 [shape = 'u8[1024]{0}', space=vmem, size = 0x400, scoped, tag = 'output window, operand 0, single buffered']
    %12 = vsyncpa [#allocation3], 0
    %13 = vsyncpa [#allocation4], 0
    // Predicated region
    $region2: #{tpu_custom_call.1} parent=1 // pred_check
      _
    $region3: #{tpu_custom_call.1} parent=1 // pred_check_branch
      %15 = sbr.rel (0) target = $region5
    $region4: #{tpu_custom_call.1} parent=1 // pred_region
      _
    $region5: #{tpu_custom_call.1} parent=1 // pred_fallthru
      _
    // Predicated region
    $region6: #{tpu_custom_call.1} parent=1 // pred_check
      _
    $region7: #{tpu_custom_call.1} parent=1 // pred_check_branch
      %17 = sbr.rel (0) target = $region9
    $region8: #{tpu_custom_call.1} parent=1 // pred_region
      %s19 = ssub.s32 1024, 1024
      %20 = vsyncadd [#allocation3], %s19
      %s21 = sshll.u32 [#allocation2], 4
      %s22 = int_to_ptr.vmem [resolvable:$true] %s21
      %27 = dma.hbm_to_vmem [thread:$0]  %s1, 1024, %s22, [#allocation3], 128, 128, 8
    $region9: #{tpu_custom_call.1} parent=1 // pred_fallthru
      _
    // Predicated region
    $region10: #{tpu_custom_call.1} parent=1 // pred_check
      _
    $region11: #{tpu_custom_call.1} parent=1 // pred_check_branch
      %29 = sbr.rel (0) target = $region13
    $region12: #{tpu_custom_call.1} parent=1 // pred_region
      _
    $region13: #{tpu_custom_call.1} parent=1 // pred_fallthru
      _
    // Predicated region
    $region14: #{tpu_custom_call.1} parent=1 // pred_check
      _
    $region15: #{tpu_custom_call.1} parent=1 // pred_check_branch
      %31 = sbr.rel (0) target = $region17
    $region16: #{tpu_custom_call.1} parent=1 // pred_region
      _
    $region17: #{tpu_custom_call.1} parent=1 // pred_fallthru
      _
    // Predicated region
    $region18: #{tpu_custom_call.1} parent=1 // pred_check
      _
    $region19: #{tpu_custom_call.1} parent=1 // pred_check_branch
      %33 = sbr.rel (0) target = $region21
    $region20: #{tpu_custom_call.1} parent=1 // pred_region
      _
    $region21: #{tpu_custom_call.1} parent=1 // pred_fallthru
      _
    // Predicated region
    $region22: #{tpu_custom_call.1} parent=1 // pred_check
      _
    $region23: #{tpu_custom_call.1} parent=1 // pred_check_branch
      %35 = sbr.rel (0) target = $region25
    $region24: #{tpu_custom_call.1} parent=1 // pred_region
      _
    $region25: #{tpu_custom_call.1} parent=1 // pred_fallthru
      _
    // Predicated region
    $region26: #{tpu_custom_call.1} parent=1 // pred_check
      _
    $region27: #{tpu_custom_call.1} parent=1 // pred_check_branch
      %37 = sbr.rel (0) target = $region29
    $region28: #{tpu_custom_call.1} parent=1 // pred_region
      _
    $region29: #{tpu_custom_call.1} parent=1 // pred_fallthru
      _
    // Predicated region
    $region30: #{tpu_custom_call.1} parent=1 // pred_check
      _
    $region31: #{tpu_custom_call.1} parent=1 // pred_check_branch
      %39 = sbr.rel (0) target = $region33
    $region32: #{tpu_custom_call.1} parent=1 // pred_region
      %40 = dma.done [#allocation3], 1024
    $region33: #{tpu_custom_call.1} parent=1 // pred_fallthru
      _
    %v41 = vld [vmem:[%s0] sm:$0x3]
    %v42 = vld [vmem:[#allocation2] sm:$0xff]
    %v43 = vld [vmem:[#allocation2 + $0x8] sm:$0xff]
    %v44 = vld [vmem:[#allocation2 + $0x10] sm:$0xff]
    %v45 = vld [vmem:[#allocation2 + $0x18] sm:$0xff]
    %v46 = vld [vmem:[#allocation2 + $0x20] sm:$0xff]
    %v47 = vld [vmem:[#allocation2 + $0x28] sm:$0xff]
    %v48 = vld [vmem:[#allocation2 + $0x30] sm:$0xff]
    %v49 = vld [vmem:[#allocation2 + $0x38] sm:$0xff]
    %v50 = vld [vmem:[%s2] sm:$0x1]
    %v52 = vlaneseq
    %v53 = vshrl.u32 %v52, 7
    %v54 = vsub.s32 0, %v53
    %v55 = vrot.slane %v50, %v54
    %vm57 = vcmask 523264
    %v59 = vsel %vm57, %v41, 0
    %61 = vmatprep.subr.mxu0 0.0
    %62 = vmatpush1.msra.mxu0 %v42
    %63 = vmatprep.subr.mxu0 0.0
    %64 = vmatpush1.msra.mxu0 %v43
    %65 = vmatprep.subr.mxu0 0.0
    %66 = vmatpush1.msra.mxu0 %v44
    %67 = vmatprep.subr.mxu0 0.0
    %68 = vmatpush1.msra.mxu0 %v45
    %69 = vmatprep.subr.mxu0 0.0
    %70 = vmatpush1.msra.mxu0 %v46
    %71 = vmatprep.subr.mxu0 0.0
    %72 = vmatpush1.msra.mxu0 %v47
    %73 = vmatprep.subr.mxu0 0.0
    %74 = vmatpush1.msra.mxu0 %v48
    %75 = vmatprep.subr.mxu0 0.0
    %76 = vmatpush1.msra.mxu0 %v49
    %77 = vmatprep.subr.mxu0 0.0
    %78 = vmatpush1.msra.mxu0 0.0
    %79 = vmatprep.subr.mxu0 0.0
    %80 = vmatpush1.msra.mxu0 0.0
    %81 = vmatprep.subr.mxu0 0.0
    %82 = vmatpush1.msra.mxu0 0.0
    %83 = vmatprep.subr.mxu0 0.0
    %84 = vmatpush1.msra.mxu0 0.0
    %85 = vmatprep.subr.mxu0 0.0
    %86 = vmatpush1.msra.mxu0 0.0
    %87 = vmatprep.subr.mxu0 0.0
    %88 = vmatpush1.msra.mxu0 0.0
    %89 = vmatprep.subr.mxu0 0.0
    %90 = vmatpush1.msra.mxu0 0.0
    %91 = vmatprep.subr.mxu0 0.0
    %92 = vmatpush1.msra.mxu0 0.0
    %93 = vmatprep.subr.mxu0 0.0
    %94 = vmatpush1.msra.mxu0 0.0
    %95 = vmatprep.subr.mxu0 0.0
    %96 = vmatpush1.msra.mxu0 0.0
    %97 = vmatprep.subr.mxu0 0.0
    %98 = vmatpush1.msra.mxu0 0.0
    %99 = vmatprep.subr.mxu0 0.0
    %100 = vmatpush1.msra.mxu0 0.0
    %101 = vmatprep.subr.mxu0 0.0
    %102 = vmatpush1.msra.mxu0 0.0
    %103 = vmatprep.subr.mxu0 0.0
    %104 = vmatpush1.msra.mxu0 0.0
    %105 = vmatprep.subr.mxu0 0.0
    %106 = vmatpush1.msra.mxu0 0.0
    %107 = vmatprep.subr.mxu0 0.0
    %108 = vmatpush1.msra.mxu0 0.0
    %109 = vmatprep.subr.mxu0 0.0
    %110 = vmatpush1.msra.mxu0 0.0
    %111 = vmatprep.subr.mxu0 0.0
    %112 = vmatpush1.msra.mxu0 0.0
    %113 = vmatprep.subr.mxu0 0.0
    %114 = vmatpush1.msra.mxu0 0.0
    %115 = vmatprep.subr.mxu0 0.0
    %116 = vmatpush1.msra.mxu0 0.0
    %117 = vmatprep.subr.mxu0 0.0
    %118 = vmatpush1.msra.mxu0 0.0
    %119 = vmatprep.subr.mxu0 0.0
    %120 = vmatpush1.msra.mxu0 0.0
    %121 = vmatprep.subr.mxu0 0.0
    %122 = vmatpush1.msra.mxu0 0.0
    %123 = vmatprep.subr.mxu0 0.0
    %124 = vmatpush1.msra.mxu0 0.0
    %125 = vmatprep.mubr.f32.mxu0 0.0
    %126 = vmatmul.mubr.f32.gmra.mrb[0].mxu0 %v59
    %v127 = vpop.f32.mrb[0].mxu0
    %v128 = vadd.f32 %v55, %v127
    %v129 = vpop.f32.mrb[0].mxu0
    %130 = vdwg.mxu0
    %v131 = vmax.f32 %v128, 0.0
    %v132 = vld [vmem:[%s3] sm:$0xff]
    %v133 = vld [vmem:[%s3 + $0x8] sm:$0xff]
    %v134 = vld [vmem:[%s3 + $0x10] sm:$0xff]
    %v135 = vld [vmem:[%s3 + $0x18] sm:$0xff]
    %v136 = vld [vmem:[%s4] sm:$0x1]
    %v138 = vlaneseq
    %v139 = vshrl.u32 %v138, 7
    %v140 = vsub.s32 0, %v139
    %v141 = vrot.slane %v136, %v140
    %vm143 = vcmask 261120
    %v145 = vsel %vm143, %v131, 0
    %147 = vmatprep.subr.mxu0 0.0
    %148 = vmatpush1.msra.mxu0 %v132
    %149 = vmatprep.subr.mxu0 0.0
    %150 = vmatpush1.msra.mxu0 %v133
    %151 = vmatprep.subr.mxu0 0.0
    %152 = vmatpush1.msra.mxu0 %v134
    %153 = vmatprep.subr.mxu0 0.0
    %154 = vmatpush1.msra.mxu0 %v135
    %155 = vmatprep.subr.mxu0 0.0
    %156 = vmatpush1.msra.mxu0 0.0
    %157 = vmatprep.subr.mxu0 0.0
    %158 = vmatpush1.msra.mxu0 0.0
    %159 = vmatprep.subr.mxu0 0.0
    %160 = vmatpush1.msra.mxu0 0.0
    %161 = vmatprep.subr.mxu0 0.0
    %162 = vmatpush1.msra.mxu0 0.0
    %163 = vmatprep.subr.mxu0 0.0
    %164 = vmatpush1.msra.mxu0 0.0
    %165 = vmatprep.subr.mxu0 0.0
    %166 = vmatpush1.msra.mxu0 0.0
    %167 = vmatprep.subr.mxu0 0.0
    %168 = vmatpush1.msra.mxu0 0.0
    %169 = vmatprep.subr.mxu0 0.0
    %170 = vmatpush1.msra.mxu0 0.0
    %171 = vmatprep.subr.mxu0 0.0
    %172 = vmatpush1.msra.mxu0 0.0
    %173 = vmatprep.subr.mxu0 0.0
    %174 = vmatpush1.msra.mxu0 0.0
    %175 = vmatprep.subr.mxu0 0.0
    %176 = vmatpush1.msra.mxu0 0.0
    %177 = vmatprep.subr.mxu0 0.0
    %178 = vmatpush1.msra.mxu0 0.0
    %179 = vmatprep.subr.mxu0 0.0
    %180 = vmatpush1.msra.mxu0 0.0
    %181 = vmatprep.subr.mxu0 0.0
    %182 = vmatpush1.msra.mxu0 0.0
    %183 = vmatprep.subr.mxu0 0.0
    %184 = vmatpush1.msra.mxu0 0.0
    %185 = vmatprep.subr.mxu0 0.0
    %186 = vmatpush1.msra.mxu0 0.0
    %187 = vmatprep.subr.mxu0 0.0
    %188 = vmatpush1.msra.mxu0 0.0
    %189 = vmatprep.subr.mxu0 0.0
    %190 = vmatpush1.msra.mxu0 0.0
    %191 = vmatprep.subr.mxu0 0.0
    %192 = vmatpush1.msra.mxu0 0.0
    %193 = vmatprep.subr.mxu0 0.0
    %194 = vmatpush1.msra.mxu0 0.0
    %195 = vmatprep.subr.mxu0 0.0
    %196 = vmatpush1.msra.mxu0 0.0
    %197 = vmatprep.subr.mxu0 0.0
    %198 = vmatpush1.msra.mxu0 0.0
    %199 = vmatprep.subr.mxu0 0.0
    %200 = vmatpush1.msra.mxu0 0.0
    %201 = vmatprep.subr.mxu0 0.0
    %202 = vmatpush1.msra.mxu0 0.0
    %203 = vmatprep.subr.mxu0 0.0
    %204 = vmatpush1.msra.mxu0 0.0
    %205 = vmatprep.subr.mxu0 0.0
    %206 = vmatpush1.msra.mxu0 0.0
    %207 = vmatprep.subr.mxu0 0.0
    %208 = vmatpush1.msra.mxu0 0.0
    %209 = vmatprep.subr.mxu0 0.0
    %210 = vmatpush1.msra.mxu0 0.0
    %211 = vmatprep.mubr.f32.mxu0 0.0
    %212 = vmatmul.mubr.f32.gmra.mrb[0].mxu0 %v145
    %v213 = vpop.f32.mrb[0].mxu0
    %v214 = vadd.f32 %v141, %v213
    %v215 = vpop.f32.mrb[0].mxu0
    %216 = vdwg.mxu0
    %v217 = vmax.f32 %v214, 0.0
    %v218 = vld [vmem:[%s5] sm:$0xff]
    %v219 = vld [vmem:[%s5 + $0x8] sm:$0xff]
    %v220 = vld [vmem:[%s5 + $0x10] sm:$0xff]
    %v221 = vld [vmem:[%s5 + $0x18] sm:$0xff]
    %v222 = vld [vmem:[%s6] sm:$0x1]
    %v224 = vlaneseq
    %v225 = vshrl.u32 %v224, 7
    %v226 = vsub.s32 0, %v225
    %v227 = vrot.slane %v222, %v226
    %v230 = vsel %vm143, %v217, 0
    %232 = vmatprep.subr.mxu0 0.0
    %233 = vmatpush1.msra.mxu0 %v218
    %234 = vmatprep.subr.mxu0 0.0
    %235 = vmatpush1.msra.mxu0 %v219
    %236 = vmatprep.subr.mxu0 0.0
    %237 = vmatpush1.msra.mxu0 %v220
    %238 = vmatprep.subr.mxu0 0.0
    %239 = vmatpush1.msra.mxu0 %v221
    %240 = vmatprep.subr.mxu0 0.0
    %241 = vmatpush1.msra.mxu0 0.0
    %242 = vmatprep.subr.mxu0 0.0
    %243 = vmatpush1.msra.mxu0 0.0
    %244 = vmatprep.subr.mxu0 0.0
    %245 = vmatpush1.msra.mxu0 0.0
    %246 = vmatprep.subr.mxu0 0.0
    %247 = vmatpush1.msra.mxu0 0.0
    %248 = vmatprep.subr.mxu0 0.0
    %249 = vmatpush1.msra.mxu0 0.0
    %250 = vmatprep.subr.mxu0 0.0
    %251 = vmatpush1.msra.mxu0 0.0
    %252 = vmatprep.subr.mxu0 0.0
    %253 = vmatpush1.msra.mxu0 0.0
    %254 = vmatprep.subr.mxu0 0.0
    %255 = vmatpush1.msra.mxu0 0.0
    %256 = vmatprep.subr.mxu0 0.0
    %257 = vmatpush1.msra.mxu0 0.0
    %258 = vmatprep.subr.mxu0 0.0
    %259 = vmatpush1.msra.mxu0 0.0
    %260 = vmatprep.subr.mxu0 0.0
    %261 = vmatpush1.msra.mxu0 0.0
    %262 = vmatprep.subr.mxu0 0.0
    %263 = vmatpush1.msra.mxu0 0.0
    %264 = vmatprep.subr.mxu0 0.0
    %265 = vmatpush1.msra.mxu0 0.0
    %266 = vmatprep.subr.mxu0 0.0
    %267 = vmatpush1.msra.mxu0 0.0
    %268 = vmatprep.subr.mxu0 0.0
    %269 = vmatpush1.msra.mxu0 0.0
    %270 = vmatprep.subr.mxu0 0.0
    %271 = vmatpush1.msra.mxu0 0.0
    %272 = vmatprep.subr.mxu0 0.0
    %273 = vmatpush1.msra.mxu0 0.0
    %274 = vmatprep.subr.mxu0 0.0
    %275 = vmatpush1.msra.mxu0 0.0
    %276 = vmatprep.subr.mxu0 0.0
    %277 = vmatpush1.msra.mxu0 0.0
    %278 = vmatprep.subr.mxu0 0.0
    %279 = vmatpush1.msra.mxu0 0.0
    %280 = vmatprep.subr.mxu0 0.0
    %281 = vmatpush1.msra.mxu0 0.0
    %282 = vmatprep.subr.mxu0 0.0
    %283 = vmatpush1.msra.mxu0 0.0
    %284 = vmatprep.subr.mxu0 0.0
    %285 = vmatpush1.msra.mxu0 0.0
    %286 = vmatprep.subr.mxu0 0.0
    %287 = vmatpush1.msra.mxu0 0.0
    %288 = vmatprep.subr.mxu0 0.0
    %289 = vmatpush1.msra.mxu0 0.0
    %290 = vmatprep.subr.mxu0 0.0
    %291 = vmatpush1.msra.mxu0 0.0
    %292 = vmatprep.subr.mxu0 0.0
    %293 = vmatpush1.msra.mxu0 0.0
    %294 = vmatprep.subr.mxu0 0.0
    %295 = vmatpush1.msra.mxu0 0.0
    %296 = vmatprep.mubr.f32.mxu0 0.0
    %297 = vmatmul.mubr.f32.gmra.mrb[0].mxu0 %v230
    %v298 = vpop.f32.mrb[0].mxu0
    %v299 = vadd.f32 %v227, %v298
    %v300 = vpop.f32.mrb[0].mxu0
    %301 = vdwg.mxu0
    %s302 = scalar_lea.vmem %s3, 32
    %v303 = vld [vmem:[%s302] sm:$0xff]
    %v304 = vld [vmem:[%s302 + $0x8] sm:$0xff]
    %v305 = vld [vmem:[%s302 + $0x10] sm:$0xff]
    %v306 = vld [vmem:[%s302 + $0x18] sm:$0xff]
    %s307 = scalar_lea.vmem %s4, 1
    %v308 = vld [vmem:[%s307] sm:$0x1]
    %v310 = vlaneseq
    %v311 = vshrl.u32 %v310, 7
    %v312 = vsub.s32 0, %v311
    %v313 = vrot.slane %v308, %v312
    %315 = vrot.lane.b32.xlu0 %v131, 96
    %v316 = vpop.permute.xlu0 %315
    %v317 = vsel %vm143, %v316, 0
    %319 = vmatprep.subr.mxu0 0.0
    %320 = vmatpush1.msra.mxu0 %v303
    %321 = vmatprep.subr.mxu0 0.0
    %322 = vmatpush1.msra.mxu0 %v304
    %323 = vmatprep.subr.mxu0 0.0
    %324 = vmatpush1.msra.mxu0 %v305
    %325 = vmatprep.subr.mxu0 0.0
    %326 = vmatpush1.msra.mxu0 %v306
    %327 = vmatprep.subr.mxu0 0.0
    %328 = vmatpush1.msra.mxu0 0.0
    %329 = vmatprep.subr.mxu0 0.0
    %330 = vmatpush1.msra.mxu0 0.0
    %331 = vmatprep.subr.mxu0 0.0
    %332 = vmatpush1.msra.mxu0 0.0
    %333 = vmatprep.subr.mxu0 0.0
    %334 = vmatpush1.msra.mxu0 0.0
    %335 = vmatprep.subr.mxu0 0.0
    %336 = vmatpush1.msra.mxu0 0.0
    %337 = vmatprep.subr.mxu0 0.0
    %338 = vmatpush1.msra.mxu0 0.0
    %339 = vmatprep.subr.mxu0 0.0
    %340 = vmatpush1.msra.mxu0 0.0
    %341 = vmatprep.subr.mxu0 0.0
    %342 = vmatpush1.msra.mxu0 0.0
    %343 = vmatprep.subr.mxu0 0.0
    %344 = vmatpush1.msra.mxu0 0.0
    %345 = vmatprep.subr.mxu0 0.0
    %346 = vmatpush1.msra.mxu0 0.0
    %347 = vmatprep.subr.mxu0 0.0
    %348 = vmatpush1.msra.mxu0 0.0
    %349 = vmatprep.subr.mxu0 0.0
    %350 = vmatpush1.msra.mxu0 0.0
    %351 = vmatprep.subr.mxu0 0.0
    %352 = vmatpush1.msra.mxu0 0.0
    %353 = vmatprep.subr.mxu0 0.0
    %354 = vmatpush1.msra.mxu0 0.0
    %355 = vmatprep.subr.mxu0 0.0
    %356 = vmatpush1.msra.mxu0 0.0
    %357 = vmatprep.subr.mxu0 0.0
    %358 = vmatpush1.msra.mxu0 0.0
    %359 = vmatprep.subr.mxu0 0.0
    %360 = vmatpush1.msra.mxu0 0.0
    %361 = vmatprep.subr.mxu0 0.0
    %362 = vmatpush1.msra.mxu0 0.0
    %363 = vmatprep.subr.mxu0 0.0
    %364 = vmatpush1.msra.mxu0 0.0
    %365 = vmatprep.subr.mxu0 0.0
    %366 = vmatpush1.msra.mxu0 0.0
    %367 = vmatprep.subr.mxu0 0.0
    %368 = vmatpush1.msra.mxu0 0.0
    %369 = vmatprep.subr.mxu0 0.0
    %370 = vmatpush1.msra.mxu0 0.0
    %371 = vmatprep.subr.mxu0 0.0
    %372 = vmatpush1.msra.mxu0 0.0
    %373 = vmatprep.subr.mxu0 0.0
    %374 = vmatpush1.msra.mxu0 0.0
    %375 = vmatprep.subr.mxu0 0.0
    %376 = vmatpush1.msra.mxu0 0.0
    %377 = vmatprep.subr.mxu0 0.0
    %378 = vmatpush1.msra.mxu0 0.0
    %379 = vmatprep.subr.mxu0 0.0
    %380 = vmatpush1.msra.mxu0 0.0
    %381 = vmatprep.subr.mxu0 0.0
    %382 = vmatpush1.msra.mxu0 0.0
    %383 = vmatprep.mubr.f32.mxu0 0.0
    %384 = vmatmul.mubr.f32.gmra.mrb[0].mxu0 %v317
    %v385 = vpop.f32.mrb[0].mxu0
    %v386 = vadd.f32 %v313, %v385
    %v387 = vpop.f32.mrb[0].mxu0
    %388 = vdwg.mxu0
    %v389 = vmax.f32 %v386, 0.0
    %s390 = scalar_lea.vmem %s5, 32
    %v391 = vld [vmem:[%s390] sm:$0xff]
    %v392 = vld [vmem:[%s390 + $0x8] sm:$0xff]
    %v393 = vld [vmem:[%s390 + $0x10] sm:$0xff]
    %v394 = vld [vmem:[%s390 + $0x18] sm:$0xff]
    %s395 = scalar_lea.vmem %s6, 1
    %v396 = vld [vmem:[%s395] sm:$0x1]
    %v398 = vlaneseq
    %v399 = vshrl.u32 %v398, 7
    %v400 = vsub.s32 0, %v399
    %v401 = vrot.slane %v396, %v400
    %v404 = vsel %vm143, %v389, 0
    %406 = vmatprep.subr.mxu0 0.0
    %407 = vmatpush1.msra.mxu0 %v391
    %408 = vmatprep.subr.mxu0 0.0
    %409 = vmatpush1.msra.mxu0 %v392
    %410 = vmatprep.subr.mxu0 0.0
    %411 = vmatpush1.msra.mxu0 %v393
    %412 = vmatprep.subr.mxu0 0.0
    %413 = vmatpush1.msra.mxu0 %v394
    %414 = vmatprep.subr.mxu0 0.0
    %415 = vmatpush1.msra.mxu0 0.0
    %416 = vmatprep.subr.mxu0 0.0
    %417 = vmatpush1.msra.mxu0 0.0
    %418 = vmatprep.subr.mxu0 0.0
    %419 = vmatpush1.msra.mxu0 0.0
    %420 = vmatprep.subr.mxu0 0.0
    %421 = vmatpush1.msra.mxu0 0.0
    %422 = vmatprep.subr.mxu0 0.0
    %423 = vmatpush1.msra.mxu0 0.0
    %424 = vmatprep.subr.mxu0 0.0
    %425 = vmatpush1.msra.mxu0 0.0
    %426 = vmatprep.subr.mxu0 0.0
    %427 = vmatpush1.msra.mxu0 0.0
    %428 = vmatprep.subr.mxu0 0.0
    %429 = vmatpush1.msra.mxu0 0.0
    %430 = vmatprep.subr.mxu0 0.0
    %431 = vmatpush1.msra.mxu0 0.0
    %432 = vmatprep.subr.mxu0 0.0
    %433 = vmatpush1.msra.mxu0 0.0
    %434 = vmatprep.subr.mxu0 0.0
    %435 = vmatpush1.msra.mxu0 0.0
    %436 = vmatprep.subr.mxu0 0.0
    %437 = vmatpush1.msra.mxu0 0.0
    %438 = vmatprep.subr.mxu0 0.0
    %439 = vmatpush1.msra.mxu0 0.0
    %440 = vmatprep.subr.mxu0 0.0
    %441 = vmatpush1.msra.mxu0 0.0
    %442 = vmatprep.subr.mxu0 0.0
    %443 = vmatpush1.msra.mxu0 0.0
    %444 = vmatprep.subr.mxu0 0.0
    %445 = vmatpush1.msra.mxu0 0.0
    %446 = vmatprep.subr.mxu0 0.0
    %447 = vmatpush1.msra.mxu0 0.0
    %448 = vmatprep.subr.mxu0 0.0
    %449 = vmatpush1.msra.mxu0 0.0
    %450 = vmatprep.subr.mxu0 0.0
    %451 = vmatpush1.msra.mxu0 0.0
    %452 = vmatprep.subr.mxu0 0.0
    %453 = vmatpush1.msra.mxu0 0.0
    %454 = vmatprep.subr.mxu0 0.0
    %455 = vmatpush1.msra.mxu0 0.0
    %456 = vmatprep.subr.mxu0 0.0
    %457 = vmatpush1.msra.mxu0 0.0
    %458 = vmatprep.subr.mxu0 0.0
    %459 = vmatpush1.msra.mxu0 0.0
    %460 = vmatprep.subr.mxu0 0.0
    %461 = vmatpush1.msra.mxu0 0.0
    %462 = vmatprep.subr.mxu0 0.0
    %463 = vmatpush1.msra.mxu0 0.0
    %464 = vmatprep.subr.mxu0 0.0
    %465 = vmatpush1.msra.mxu0 0.0
    %466 = vmatprep.subr.mxu0 0.0
    %467 = vmatpush1.msra.mxu0 0.0
    %468 = vmatprep.subr.mxu0 0.0
    %469 = vmatpush1.msra.mxu0 0.0
    %470 = vmatprep.mubr.f32.mxu0 0.0
    %471 = vmatmul.mubr.f32.gmra.mrb[0].mxu0 %v404
    %v472 = vpop.f32.mrb[0].mxu0
    %v473 = vadd.f32 %v401, %v472
    %v474 = vpop.f32.mrb[0].mxu0
    %475 = vdwg.mxu0
    %s476 = scalar_lea.vmem %s3, 64
    %v477 = vld [vmem:[%s476] sm:$0xff]
    %v478 = vld [vmem:[%s476 + $0x8] sm:$0xff]
    %v479 = vld [vmem:[%s476 + $0x10] sm:$0xff]
    %v480 = vld [vmem:[%s476 + $0x18] sm:$0xff]
    %s481 = scalar_lea.vmem %s4, 2
    %v482 = vld [vmem:[%s481] sm:$0x1]
    %v484 = vlaneseq
    %v485 = vshrl.u32 %v484, 7
    %v486 = vsub.s32 0, %v485
    %v487 = vrot.slane %v482, %v486
    %489 = vrot.lane.b32.xlu0 %v131, 64
    %v490 = vpop.permute.xlu0 %489
    %v491 = vsel %vm143, %v490, 0
    %493 = vmatprep.subr.mxu0 0.0
    %494 = vmatpush1.msra.mxu0 %v477
    %495 = vmatprep.subr.mxu0 0.0
    %496 = vmatpush1.msra.mxu0 %v478
    %497 = vmatprep.subr.mxu0 0.0
    %498 = vmatpush1.msra.mxu0 %v479
    %499 = vmatprep.subr.mxu0 0.0
    %500 = vmatpush1.msra.mxu0 %v480
    %501 = vmatprep.subr.mxu0 0.0
    %502 = vmatpush1.msra.mxu0 0.0
    %503 = vmatprep.subr.mxu0 0.0
    %504 = vmatpush1.msra.mxu0 0.0
    %505 = vmatprep.subr.mxu0 0.0
    %506 = vmatpush1.msra.mxu0 0.0
    %507 = vmatprep.subr.mxu0 0.0
    %508 = vmatpush1.msra.mxu0 0.0
    %509 = vmatprep.subr.mxu0 0.0
    %510 = vmatpush1.msra.mxu0 0.0
    %511 = vmatprep.subr.mxu0 0.0
    %512 = vmatpush1.msra.mxu0 0.0
    %513 = vmatprep.subr.mxu0 0.0
    %514 = vmatpush1.msra.mxu0 0.0
    %515 = vmatprep.subr.mxu0 0.0
    %516 = vmatpush1.msra.mxu0 0.0
    %517 = vmatprep.subr.mxu0 0.0
    %518 = vmatpush1.msra.mxu0 0.0
    %519 = vmatprep.subr.mxu0 0.0
    %520 = vmatpush1.msra.mxu0 0.0
    %521 = vmatprep.subr.mxu0 0.0
    %522 = vmatpush1.msra.mxu0 0.0
    %523 = vmatprep.subr.mxu0 0.0
    %524 = vmatpush1.msra.mxu0 0.0
    %525 = vmatprep.subr.mxu0 0.0
    %526 = vmatpush1.msra.mxu0 0.0
    %527 = vmatprep.subr.mxu0 0.0
    %528 = vmatpush1.msra.mxu0 0.0
    %529 = vmatprep.subr.mxu0 0.0
    %530 = vmatpush1.msra.mxu0 0.0
    %531 = vmatprep.subr.mxu0 0.0
    %532 = vmatpush1.msra.mxu0 0.0
    %533 = vmatprep.subr.mxu0 0.0
    %534 = vmatpush1.msra.mxu0 0.0
    %535 = vmatprep.subr.mxu0 0.0
    %536 = vmatpush1.msra.mxu0 0.0
    %537 = vmatprep.subr.mxu0 0.0
    %538 = vmatpush1.msra.mxu0 0.0
    %539 = vmatprep.subr.mxu0 0.0
    %540 = vmatpush1.msra.mxu0 0.0
    %541 = vmatprep.subr.mxu0 0.0
    %542 = vmatpush1.msra.mxu0 0.0
    %543 = vmatprep.subr.mxu0 0.0
    %544 = vmatpush1.msra.mxu0 0.0
    %545 = vmatprep.subr.mxu0 0.0
    %546 = vmatpush1.msra.mxu0 0.0
    %547 = vmatprep.subr.mxu0 0.0
    %548 = vmatpush1.msra.mxu0 0.0
    %549 = vmatprep.subr.mxu0 0.0
    %550 = vmatpush1.msra.mxu0 0.0
    %551 = vmatprep.subr.mxu0 0.0
    %552 = vmatpush1.msra.mxu0 0.0
    %553 = vmatprep.subr.mxu0 0.0
    %554 = vmatpush1.msra.mxu0 0.0
    %555 = vmatprep.subr.mxu0 0.0
    %556 = vmatpush1.msra.mxu0 0.0
    %557 = vmatprep.mubr.f32.mxu0 0.0
    %558 = vmatmul.mubr.f32.gmra.mrb[0].mxu0 %v491
    %v559 = vpop.f32.mrb[0].mxu0
    %v560 = vadd.f32 %v487, %v559
    %v561 = vpop.f32.mrb[0].mxu0
    %562 = vdwg.mxu0
    %v563 = vmax.f32 %v560, 0.0
    %s564 = scalar_lea.vmem %s5, 64
    %v565 = vld [vmem:[%s564] sm:$0xff]
    %v566 = vld [vmem:[%s564 + $0x8] sm:$0xff]
    %v567 = vld [vmem:[%s564 + $0x10] sm:$0xff]
    %v568 = vld [vmem:[%s564 + $0x18] sm:$0xff]
    %s569 = scalar_lea.vmem %s6, 2
    %v570 = vld [vmem:[%s569] sm:$0x1]
    %v572 = vlaneseq
    %v573 = vshrl.u32 %v572, 7
    %v574 = vsub.s32 0, %v573
    %v575 = vrot.slane %v570, %v574
    %v578 = vsel %vm143, %v563, 0
    %580 = vmatprep.subr.mxu0 0.0
    %581 = vmatpush1.msra.mxu0 %v565
    %582 = vmatprep.subr.mxu0 0.0
    %583 = vmatpush1.msra.mxu0 %v566
    %584 = vmatprep.subr.mxu0 0.0
    %585 = vmatpush1.msra.mxu0 %v567
    %586 = vmatprep.subr.mxu0 0.0
    %587 = vmatpush1.msra.mxu0 %v568
    %588 = vmatprep.subr.mxu0 0.0
    %589 = vmatpush1.msra.mxu0 0.0
    %590 = vmatprep.subr.mxu0 0.0
    %591 = vmatpush1.msra.mxu0 0.0
    %592 = vmatprep.subr.mxu0 0.0
    %593 = vmatpush1.msra.mxu0 0.0
    %594 = vmatprep.subr.mxu0 0.0
    %595 = vmatpush1.msra.mxu0 0.0
    %596 = vmatprep.subr.mxu0 0.0
    %597 = vmatpush1.msra.mxu0 0.0
    %598 = vmatprep.subr.mxu0 0.0
    %599 = vmatpush1.msra.mxu0 0.0
    %600 = vmatprep.subr.mxu0 0.0
    %601 = vmatpush1.msra.mxu0 0.0
    %602 = vmatprep.subr.mxu0 0.0
    %603 = vmatpush1.msra.mxu0 0.0
    %604 = vmatprep.subr.mxu0 0.0
    %605 = vmatpush1.msra.mxu0 0.0
    %606 = vmatprep.subr.mxu0 0.0
    %607 = vmatpush1.msra.mxu0 0.0
    %608 = vmatprep.subr.mxu0 0.0
    %609 = vmatpush1.msra.mxu0 0.0
    %610 = vmatprep.subr.mxu0 0.0
    %611 = vmatpush1.msra.mxu0 0.0
    %612 = vmatprep.subr.mxu0 0.0
    %613 = vmatpush1.msra.mxu0 0.0
    %614 = vmatprep.subr.mxu0 0.0
    %615 = vmatpush1.msra.mxu0 0.0
    %616 = vmatprep.subr.mxu0 0.0
    %617 = vmatpush1.msra.mxu0 0.0
    %618 = vmatprep.subr.mxu0 0.0
    %619 = vmatpush1.msra.mxu0 0.0
    %620 = vmatprep.subr.mxu0 0.0
    %621 = vmatpush1.msra.mxu0 0.0
    %622 = vmatprep.subr.mxu0 0.0
    %623 = vmatpush1.msra.mxu0 0.0
    %624 = vmatprep.subr.mxu0 0.0
    %625 = vmatpush1.msra.mxu0 0.0
    %626 = vmatprep.subr.mxu0 0.0
    %627 = vmatpush1.msra.mxu0 0.0
    %628 = vmatprep.subr.mxu0 0.0
    %629 = vmatpush1.msra.mxu0 0.0
    %630 = vmatprep.subr.mxu0 0.0
    %631 = vmatpush1.msra.mxu0 0.0
    %632 = vmatprep.subr.mxu0 0.0
    %633 = vmatpush1.msra.mxu0 0.0
    %634 = vmatprep.subr.mxu0 0.0
    %635 = vmatpush1.msra.mxu0 0.0
    %636 = vmatprep.subr.mxu0 0.0
    %637 = vmatpush1.msra.mxu0 0.0
    %638 = vmatprep.subr.mxu0 0.0
    %639 = vmatpush1.msra.mxu0 0.0
    %640 = vmatprep.subr.mxu0 0.0
    %641 = vmatpush1.msra.mxu0 0.0
    %642 = vmatprep.subr.mxu0 0.0
    %643 = vmatpush1.msra.mxu0 0.0
    %644 = vmatprep.mubr.f32.mxu0 0.0
    %645 = vmatmul.mubr.f32.gmra.mrb[0].mxu0 %v578
    %v646 = vpop.f32.mrb[0].mxu0
    %v647 = vadd.f32 %v575, %v646
    %v648 = vpop.f32.mrb[0].mxu0
    %649 = vdwg.mxu0
    %651 = vrot.lane.b32.xlu0 %v473, 4
    %v652 = vpop.permute.xlu0 %651
    %655 = vrot.lane.b32.xlu0 %v647, 8
    %v656 = vpop.permute.xlu0 %655
    %vm658 = vcmask 31744
    %v659 = vsel %vm658, %v299, %v652
    %vm660 = vcmask 64512
    %v661 = vsel %vm660, %v659, %v656
    %vm662 = vcmask 91136
    %663 = vst.msk [vmem:[#allocation5] sm:$0x3] %vm662, %v661
    // Predicated region
    $region34: #{tpu_custom_call.1} parent=1 // pred_check
      _
    $region35: #{tpu_custom_call.1} parent=1 // pred_check_branch
      %665 = sbr.rel (0) target = $region37
    $region36: #{tpu_custom_call.1} parent=1 // pred_region
      %s667 = ssub.s32 32, 32
      %668 = vsyncadd [#allocation4], %s667
      %s670 = sshll.u32 [#allocation5], 4
      %s671 = int_to_ptr.vmem [resolvable:$true] %s670
      %673 = dma.vmem_to_hbm [thread:$0]  %s671, 32, %s7, [#allocation4]
    $region37: #{tpu_custom_call.1} parent=1 // pred_fallthru
      _
    // Predicated region
    $region38: #{tpu_custom_call.1} parent=1 // pred_check
      _
    $region39: #{tpu_custom_call.1} parent=1 // pred_check_branch
      %675 = sbr.rel (0) target = $region41
    $region40: #{tpu_custom_call.1} parent=1 // pred_region
      %676 = dma.done [#allocation4], 32
    $region41: #{tpu_custom_call.1} parent=1 // pred_fallthru
      _
    %677 = vsyncpa [#allocation3], 1
    %678 = vsyncpa [#allocation4], 1

</llo_original>
